<compile_context>
chip_gen: v7x
topology: tpu7x:2x2x1
jax: 0.10.0
libtpu: 0.0.40
codegen_flags: <defaults>
</compile_context>

<pallas_src>
import functools

import jax
import jax.numpy as jnp
import numpy as np
from jax.experimental import pallas as pl
from jax.experimental.pallas import tpu as pltpu


def _residual_block_kernel(x_ref, w1_ref, b1_ref, w2_ref, b2_ref, o_ref, *,
                           kernel_size, dilation, seg_len, use_roll):
    """One batch tile per grid step; channels on sublanes, batch*length on lanes.

    x_ref:  (Cp, N)      N = bt * seg_len  (bt length-L segments side by side)
    w1_ref: (Fp, K*Cp)   conv1 weight, column index = k*Cp + c
    b1_ref: (Fp, 1)      f32
    w2_ref: (Cp, K*Fp)   conv2 weight, column index = k*Fp + f
    b2_ref: (Cp, 1)      f32
    o_ref:  (Cp, N)
    """
    K, d, L = kernel_size, dilation, seg_len
    x = x_ref[...]                                    # (Cp, N), input dtype
    N = x.shape[1]

    def causal_taps(v):
        # (rows, N) -> (K*rows, N) im2col slab: tap k is v shifted right along
        # lanes by (K-1-k)*d with zero fill; the mask keeps each length-L
        # batch segment causally independent of its left neighbour.
        pos = jax.lax.broadcasted_iota(jnp.int32, v.shape, 1) % L
        cols = []
        for k in range(K):
            s = (K - 1 - k) * d
            if s == 0:
                cols.append(v)
                continue
            if use_roll:
                shifted = pltpu.roll(v, shift=s, axis=1)     # XLU lane rotate
            else:
                # Fallback for lane-unaligned tiles (single-step grid only).
                shifted = jnp.concatenate(
                    [jnp.zeros((v.shape[0], s), v.dtype), v[:, :N - s]], axis=1)
            cols.append(jnp.where(pos >= s, shifted, jnp.zeros_like(shifted)))
        return jnp.concatenate(cols, axis=0)          # sublane-aligned pieces

    # conv1 + ReLU (dropout == identity in eval mode): one MXU contraction.
    h = jnp.dot(w1_ref[...], causal_taps(x), preferred_element_type=jnp.float32)
    h = jnp.maximum(h + b1_ref[...], 0.0)             # (Fp, N) f32, lane-broadcast bias
    h = h.astype(x.dtype)                             # keep conv2 on input-dtype MXU path

    # conv2 + ReLU: one MXU contraction.
    y = jnp.dot(w2_ref[...], causal_taps(h), preferred_element_type=jnp.float32)
    y = jnp.maximum(y + b2_ref[...], 0.0)             # (Cp, N) f32

    # Residual add in f32; single lane-dense store.
    o_ref[...] = (y + x.astype(jnp.float32)).astype(o_ref.dtype)


def _pick_batch_tile(B, L, per_batch_bytes, budget_bytes):
    """Largest divisor bt of B whose per-step working set fits the budget,
    keeps blocks lane-aligned (bt*L % 128 == 0, unless bt covers the whole
    batch) and -- when possible -- leaves >= 2 grid steps for v7x megacore."""
    divs = [d for d in range(1, B + 1) if B % d == 0]
    aligned = [d for d in divs if (d * L) % 128 == 0 or d == B]
    fits = [d for d in aligned if d * per_batch_bytes <= budget_bytes]
    if not fits:
        fits = [min(aligned)]
    multi = [d for d in fits if B // d >= 2]
    return max(multi) if multi else max(fits)


def residual_block_forward(x_ncl, w1, b1, w2, b2, kernel_size, dilation):
    """Forward pass matching _ResidualBlock.forward.

    x_ncl: (B, d_feature, L)  -- PyTorch NCL layout
    w1:    (num_filters, d_feature, K)  -- Conv1d weight (post weight_norm)
    b1:    (num_filters,)
    w2:    (d_feature, num_filters, K)
    b2:    (d_feature,)
    Returns (B, d_feature, L).
    """
    B, C, L = x_ncl.shape
    F_ = w1.shape[0]
    K = kernel_size
    assert w1.shape == (F_, C, K) and w2.shape == (C, F_, K)

    dtype = x_ncl.dtype
    itm = jnp.dtype(dtype).itemsize
    sub = 8 * (4 // itm)                       # sublane multiple: 8 f32, 16 bf16
    Cp = -(-C // sub) * sub
    Fp = -(-F_ // sub) * sub

    # Lane-dense 2-D slab: channels on sublanes, batch*length on lanes
    # (layout plumbing in XLA, not compute).
    x2 = jnp.transpose(x_ncl, (1, 0, 2)).reshape(C, B * L)
    if Cp != C:
        x2 = jnp.pad(x2, ((0, Cp - C), (0, 0)))

    # Fold taps into the contraction dim (column index = k*Cin_p + cin),
    # zero-padding channels so every im2col piece is a full sublane tile.
    def pack_weight(w, cout_p, cin_p):
        cout, cin, _ = w.shape
        wp = jnp.pad(w, ((0, cout_p - cout), (0, cin_p - cin), (0, 0)))
        return jnp.transpose(wp, (0, 2, 1)).reshape(cout_p, K * cin_p).astype(dtype)

    w1_2d = pack_weight(w1, Fp, Cp)            # (Fp, K*Cp)
    w2_2d = pack_weight(w2, Cp, Fp)            # (Cp, K*Fp)
    b1_2d = jnp.pad(b1.astype(jnp.float32), (0, Fp - F_))[:, None]   # (Fp, 1)
    b2_2d = jnp.pad(b2.astype(jnp.float32), (0, Cp - C))[:, None]    # (Cp, 1)

    # Per-batch-element VMEM estimate: double-buffered in/out blocks + im2col
    # slabs + f32 intermediates.  Budget ~half the scoped VMEM limit below.
    per_batch_bytes = L * (4 * Cp * itm + K * Cp * itm + K * Fp * itm
                           + (Fp + 2 * Cp) * 4 + Fp * itm)
    bt = _pick_batch_tile(B, L, per_batch_bytes, budget_bytes=16 * 1024 * 1024)
    N = bt * L
    use_roll = (N % 128 == 0)

    kernel = functools.partial(
        _residual_block_kernel,
        kernel_size=K, dilation=dilation, seg_len=L, use_roll=use_roll)

    out2 = pl.pallas_call(
        kernel,
        out_shape=jax.ShapeDtypeStruct((Cp, B * L), dtype),
        grid_spec=pltpu.PrefetchScalarGridSpec(
            num_scalar_prefetch=0,
            grid=(B // bt,),
            in_specs=[
                pl.BlockSpec((Cp, N), lambda i: (0, i)),
                pl.BlockSpec((Fp, K * Cp), lambda i: (0, 0)),
                pl.BlockSpec((Fp, 1), lambda i: (0, 0)),
                pl.BlockSpec((Cp, K * Fp), lambda i: (0, 0)),
                pl.BlockSpec((Cp, 1), lambda i: (0, 0)),
            ],
            out_specs=pl.BlockSpec((Cp, N), lambda i: (0, i)),
        ),
        compiler_params=pltpu.CompilerParams(
            dimension_semantics=("parallel",),
            vmem_limit_bytes=32 * 1024 * 1024),
    )(x2, w1_2d, b1_2d, w2_2d, b2_2d)

    # Back to NCL, dropping the zero-padded channels.
    return jnp.transpose(out2[:C].reshape(C, B, L), (1, 0, 2))


def weight_norm_weight(v, g):
    """PyTorch weight_norm (dim=0): w = g * v / ||v|| (norm over all dims but 0)."""
    norm = jnp.sqrt(jnp.sum(v * v, axis=(1, 2), keepdims=True))
    return g[:, None, None] * v / norm


def reference_forward(x, w1, b1, w2, b2, kernel_size, dilation):
    """Pure-JAX reference replicating the PyTorch forward (NCL layout)."""
    padding = (kernel_size - 1) * dilation

    def causal_conv(x_ncl, w, b):
        xp = jnp.pad(x_ncl, ((0, 0), (0, 0), (padding, 0)))
        L = x_ncl.shape[2]
        out = b[None, :, None]
        for k in range(kernel_size):
            out = out + jnp.einsum(
                "oi,bit->bot", w[:, :, k],
                xp[:, :, k * dilation:k * dilation + L])
        return out

    h = jax.nn.relu(causal_conv(x, w1, b1))       # dropout(eval) == identity
    y = jax.nn.relu(causal_conv(h, w2, b2))
    return y + x


if __name__ == "__main__":
    # Module hyperparameters (small, consistent with _ResidualBlock.__init__).
    # L = 128 keeps blocks lane-aligned so the fast (roll + lane-dense) path runs.
    B, d_feature, L = 2, 4, 128
    num_filters, kernel_size, dilation, dropout_p = 8, 3, 2, 0.1

    key = jax.random.PRNGKey(0)
    k1, k2, k3, k4, k5, k6, k7 = jax.random.split(key, 7)

    x = jax.random.normal(k1, (B, d_feature, L), jnp.float32)

    # Deterministic parameter init (weight_norm params: direction v, magnitude g)
    v1 = 0.3 * jax.random.normal(k2, (num_filters, d_feature, kernel_size), jnp.float32)
    g1 = jax.random.uniform(k3, (num_filters,), jnp.float32, 0.5, 1.5)
    b1 = 0.1 * jax.random.normal(k4, (num_filters,), jnp.float32)
    v2 = 0.3 * jax.random.normal(k5, (d_feature, num_filters, kernel_size), jnp.float32)
    g2 = jax.random.uniform(k6, (d_feature,), jnp.float32, 0.5, 1.5)
    b2 = 0.1 * jax.random.normal(k7, (d_feature,), jnp.float32)

    w1 = weight_norm_weight(v1, g1)
    w2 = weight_norm_weight(v2, g2)

    out = residual_block_forward(x, w1, b1, w2, b2, kernel_size, dilation)
    out = jax.block_until_ready(out)
    assert out.shape == (B, d_feature, L) and out.dtype == jnp.float32

    ref = reference_forward(x, w1, b1, w2, b2, kernel_size, dilation)
    np.testing.assert_allclose(np.asarray(out), np.asarray(ref),
                               rtol=1e-4, atol=1e-5)
    print("KERNEL_OK")
</pallas_src>

<mosaic_0001>
module attributes {stable_mosaic.version = 11 : i64} {
  func.func @_residual_block_kernel(%arg0: i32, %arg1: memref<8x128xf32, #tpu.memory_space<vmem>>, %arg2: memref<8x24xf32, #tpu.memory_space<vmem>>, %arg3: memref<8x1xf32, #tpu.memory_space<vmem>>, %arg4: memref<8x24xf32, #tpu.memory_space<vmem>>, %arg5: memref<8x1xf32, #tpu.memory_space<vmem>>, %arg6: memref<8x128xf32, #tpu.memory_space<vmem>>) attributes {dimension_semantics = [#tpu.dimension_semantics<parallel>], iteration_bounds = array<i64: 2>, scalar_prefetch = 0 : i64, scratch_operands = 0 : i64, tpu.core_type = #tpu.core_type<tc>, window_params = [{transform_indices = @transform_0, window_bounds = array<i64: 8, 128>}, {pipeline_mode = #tpu.pipeline_mode<synchronous>, transform_indices = @transform_1, window_bounds = array<i64: 8, 24>}, {pipeline_mode = #tpu.pipeline_mode<synchronous>, transform_indices = @transform_2, window_bounds = array<i64: 8, 1>}, {pipeline_mode = #tpu.pipeline_mode<synchronous>, transform_indices = @transform_3, window_bounds = array<i64: 8, 24>}, {pipeline_mode = #tpu.pipeline_mode<synchronous>, transform_indices = @transform_4, window_bounds = array<i64: 8, 1>}, {transform_indices = @transform_5, window_bounds = array<i64: 8, 128>}]} {
    %c0 = arith.constant 0 : index
    %c0_0 = arith.constant 0 : index
    %0 = vector.load %arg1[%c0, %c0_0] : memref<8x128xf32, #tpu.memory_space<vmem>>, vector<8x128xf32>
    %c0_1 = arith.constant 0 : index
    %c0_2 = arith.constant 0 : index
    %1 = vector.load %arg2[%c0_1, %c0_2] : memref<8x24xf32, #tpu.memory_space<vmem>>, vector<8x24xf32>
    %2 = tpu.iota {dimensions = array<i32: 1>} : vector<8x128xi32>
    %c128_i32 = arith.constant 128 : i32
    %c0_i32 = arith.constant 0 : i32
    %3 = arith.cmpi eq, %c128_i32, %c0_i32 : i32
    %c1_i32 = arith.constant 1 : i32
    %4 = arith.select %3, %c1_i32, %c128_i32 : i32
    %5 = vector.broadcast %4 : i32 to vector<8x128xi32>
    %6 = arith.remsi %2, %5 : vector<8x128xi32>
    %c0_i32_3 = arith.constant 0 : i32
    %7 = vector.broadcast %c0_i32_3 : i32 to vector<8x128xi32>
    %8 = arith.cmpi ne, %6, %7 : vector<8x128xi32>
    %c0_i32_4 = arith.constant 0 : i32
    %9 = vector.broadcast %c0_i32_4 : i32 to vector<8x128xi32>
    %10 = arith.cmpi slt, %6, %9 : vector<8x128xi32>
    %c0_i32_5 = arith.constant 0 : i32
    %11 = arith.cmpi slt, %4, %c0_i32_5 : i32
    %12 = vector.broadcast %11 : i1 to vector<8x128xi1>
    %13 = vector.broadcast %12 : vector<8x128xi1> to vector<8x128xi1>
    %14 = arith.xori %10, %13 : vector<8x128xi1>
    %15 = arith.andi %14, %8 : vector<8x128xi1>
    %16 = vector.broadcast %4 : i32 to vector<8x128xi32>
    %17 = arith.addi %6, %16 : vector<8x128xi32>
    %18 = arith.select %15, %17, %6 : vector<8x128xi1>, vector<8x128xi32>
    %c4_i32 = arith.constant 4 : i32
    %19 = tpu.dynamic_rotate %0 by %c4_i32 dim 1 : vector<8x128xf32>, i32 -> vector<8x128xf32>
    %c4_i32_6 = arith.constant 4 : i32
    %20 = vector.broadcast %c4_i32_6 : i32 to vector<8x128xi32>
    %21 = arith.cmpi sge, %18, %20 : vector<8x128xi32>
    %cst = arith.constant 0.000000e+00 : f32
    %22 = vector.broadcast %cst : f32 to vector<8x128xf32>
    %23 = arith.select %21, %19, %22 : vector<8x128xi1>, vector<8x128xf32>
    %c2_i32 = arith.constant 2 : i32
    %24 = tpu.dynamic_rotate %0 by %c2_i32 dim 1 : vector<8x128xf32>, i32 -> vector<8x128xf32>
    %c2_i32_7 = arith.constant 2 : i32
    %25 = vector.broadcast %c2_i32_7 : i32 to vector<8x128xi32>
    %26 = arith.cmpi sge, %18, %25 : vector<8x128xi32>
    %cst_8 = arith.constant 0.000000e+00 : f32
    %27 = vector.broadcast %cst_8 : f32 to vector<8x128xf32>
    %28 = arith.select %26, %24, %27 : vector<8x128xi1>, vector<8x128xf32>
    %29 = tpu.concatenate %23, %28, %0 in 0 : vector<8x128xf32>, vector<8x128xf32>, vector<8x128xf32> -> vector<24x128xf32>
    %cst_9 = arith.constant dense<0.000000e+00> : vector<8x128xf32>
    %30 = tpu.matmul %1, %29, %cst_9 {dimension_numbers = #tpu.dot_dimension_numbers<[1], [0], [0], [1], [0, 0, 1, 1], [], []>} : vector<8x24xf32>, vector<24x128xf32>, vector<8x128xf32> -> vector<8x128xf32>
    %c0_10 = arith.constant 0 : index
    %c0_11 = arith.constant 0 : index
    %31 = vector.load %arg3[%c0_10, %c0_11] : memref<8x1xf32, #tpu.memory_space<vmem>>, vector<8x1xf32>
    %32 = vector.broadcast %31 : vector<8x1xf32> to vector<8x128xf32>
    %33 = arith.addf %30, %32 : vector<8x128xf32>
    %cst_12 = arith.constant 0.000000e+00 : f32
    %34 = vector.broadcast %cst_12 : f32 to vector<8x128xf32>
    %35 = arith.maximumf %33, %34 : vector<8x128xf32>
    %c0_13 = arith.constant 0 : index
    %c0_14 = arith.constant 0 : index
    %36 = vector.load %arg4[%c0_13, %c0_14] : memref<8x24xf32, #tpu.memory_space<vmem>>, vector<8x24xf32>
    %37 = tpu.iota {dimensions = array<i32: 1>} : vector<8x128xi32>
    %c128_i32_15 = arith.constant 128 : i32
    %c0_i32_16 = arith.constant 0 : i32
    %38 = arith.cmpi eq, %c128_i32_15, %c0_i32_16 : i32
    %c1_i32_17 = arith.constant 1 : i32
    %39 = arith.select %38, %c1_i32_17, %c128_i32_15 : i32
    %40 = vector.broadcast %39 : i32 to vector<8x128xi32>
    %41 = arith.remsi %37, %40 : vector<8x128xi32>
    %c0_i32_18 = arith.constant 0 : i32
    %42 = vector.broadcast %c0_i32_18 : i32 to vector<8x128xi32>
    %43 = arith.cmpi ne, %41, %42 : vector<8x128xi32>
    %c0_i32_19 = arith.constant 0 : i32
    %44 = vector.broadcast %c0_i32_19 : i32 to vector<8x128xi32>
    %45 = arith.cmpi slt, %41, %44 : vector<8x128xi32>
    %c0_i32_20 = arith.constant 0 : i32
    %46 = arith.cmpi slt, %39, %c0_i32_20 : i32
    %47 = vector.broadcast %46 : i1 to vector<8x128xi1>
    %48 = vector.broadcast %47 : vector<8x128xi1> to vector<8x128xi1>
    %49 = arith.xori %45, %48 : vector<8x128xi1>
    %50 = arith.andi %49, %43 : vector<8x128xi1>
    %51 = vector.broadcast %39 : i32 to vector<8x128xi32>
    %52 = arith.addi %41, %51 : vector<8x128xi32>
    %53 = arith.select %50, %52, %41 : vector<8x128xi1>, vector<8x128xi32>
    %c4_i32_21 = arith.constant 4 : i32
    %54 = tpu.dynamic_rotate %35 by %c4_i32_21 dim 1 : vector<8x128xf32>, i32 -> vector<8x128xf32>
    %c4_i32_22 = arith.constant 4 : i32
    %55 = vector.broadcast %c4_i32_22 : i32 to vector<8x128xi32>
    %56 = arith.cmpi sge, %53, %55 : vector<8x128xi32>
    %cst_23 = arith.constant 0.000000e+00 : f32
    %57 = vector.broadcast %cst_23 : f32 to vector<8x128xf32>
    %58 = arith.select %56, %54, %57 : vector<8x128xi1>, vector<8x128xf32>
    %c2_i32_24 = arith.constant 2 : i32
    %59 = tpu.dynamic_rotate %35 by %c2_i32_24 dim 1 : vector<8x128xf32>, i32 -> vector<8x128xf32>
    %c2_i32_25 = arith.constant 2 : i32
    %60 = vector.broadcast %c2_i32_25 : i32 to vector<8x128xi32>
    %61 = arith.cmpi sge, %53, %60 : vector<8x128xi32>
    %cst_26 = arith.constant 0.000000e+00 : f32
    %62 = vector.broadcast %cst_26 : f32 to vector<8x128xf32>
    %63 = arith.select %61, %59, %62 : vector<8x128xi1>, vector<8x128xf32>
    %64 = tpu.concatenate %58, %63, %35 in 0 : vector<8x128xf32>, vector<8x128xf32>, vector<8x128xf32> -> vector<24x128xf32>
    %cst_27 = arith.constant dense<0.000000e+00> : vector<8x128xf32>
    %65 = tpu.matmul %36, %64, %cst_27 {dimension_numbers = #tpu.dot_dimension_numbers<[1], [0], [0], [1], [0, 0, 1, 1], [], []>} : vector<8x24xf32>, vector<24x128xf32>, vector<8x128xf32> -> vector<8x128xf32>
    %c0_28 = arith.constant 0 : index
    %c0_29 = arith.constant 0 : index
    %66 = vector.load %arg5[%c0_28, %c0_29] : memref<8x1xf32, #tpu.memory_space<vmem>>, vector<8x1xf32>
    %67 = vector.broadcast %66 : vector<8x1xf32> to vector<8x128xf32>
    %68 = arith.addf %65, %67 : vector<8x128xf32>
    %cst_30 = arith.constant 0.000000e+00 : f32
    %69 = vector.broadcast %cst_30 : f32 to vector<8x128xf32>
    %70 = arith.maximumf %68, %69 : vector<8x128xf32>
    %71 = arith.addf %70, %0 : vector<8x128xf32>
    %c0_31 = arith.constant 0 : index
    %c0_32 = arith.constant 0 : index
    %72 = vector.load %arg6[%c0_31, %c0_32] : memref<8x128xf32, #tpu.memory_space<vmem>>, vector<8x128xf32>
    tpu.vector_store %arg6[%c0_31, %c0_32], %71 {strides = array<i32>} : memref<8x128xf32, #tpu.memory_space<vmem>>, vector<8x128xf32>,
    return
  }
  func.func @transform_0(%arg0: i32) -> (i32, i32) {
    %c0_i32 = arith.constant 0 : i32
    %c0_i32_0 = arith.constant 0 : i32
    return %c0_i32, %arg0 : i32, i32
  }
  func.func @transform_1(%arg0: i32) -> (i32, i32) {
    %c0_i32 = arith.constant 0 : i32
    %c0_i32_0 = arith.constant 0 : i32
    %c0_i32_1 = arith.constant 0 : i32
    return %c0_i32, %c0_i32_0 : i32, i32
  }
  func.func @transform_2(%arg0: i32) -> (i32, i32) {
    %c0_i32 = arith.constant 0 : i32
    %c0_i32_0 = arith.constant 0 : i32
    %c0_i32_1 = arith.constant 0 : i32
    return %c0_i32, %c0_i32_0 : i32, i32
  }
  func.func @transform_3(%arg0: i32) -> (i32, i32) {
    %c0_i32 = arith.constant 0 : i32
    %c0_i32_0 = arith.constant 0 : i32
    %c0_i32_1 = arith.constant 0 : i32
    return %c0_i32, %c0_i32_0 : i32, i32
  }
  func.func @transform_4(%arg0: i32) -> (i32, i32) {
    %c0_i32 = arith.constant 0 : i32
    %c0_i32_0 = arith.constant 0 : i32
    %c0_i32_1 = arith.constant 0 : i32
    return %c0_i32, %c0_i32_0 : i32, i32
  }
  func.func @transform_5(%arg0: i32) -> (i32, i32) {
    %c0_i32 = arith.constant 0 : i32
    %c0_i32_0 = arith.constant 0 : i32
    return %c0_i32, %arg0 : i32, i32
  }
}

</mosaic_0001>

<llo_original>
// kernel: tpu_custom_call.1
$region0: #{tpu_custom_call.1}
  #allocation0 [shape = 'u32[]', space=smem, size = 0x4, offset = 0x4, fixed_abs, tag = 'smem constant byte address 0x4 - core index']
  #allocation1 [shape = 'u32[144,128]{1,0:T(1,128)}', space=vmem, size = 0x12000, scoped, tag = 'internal scratch']
  %s0 = inlined_call_operand.vmem [shape: f32[8,256], index: 0, kind: input, shape index: {}]
  %s1 = inlined_call_operand.hbm [shape: f32[8,24], index: 1, kind: input, shape index: {}]
  %s2 = inlined_call_operand.vmem [shape: f32[8,1], index: 2, kind: input, shape index: {}]
  %s3 = inlined_call_operand.vmem [shape: f32[8,24], index: 3, kind: input, shape index: {}]
  %s4 = inlined_call_operand.vmem [shape: f32[8,1], index: 4, kind: input, shape index: {}]
  %s5 = inlined_call_operand.hbm [shape: f32[8,256], index: 5, kind: output, shape index: {}]
  %s6 = sld [smem:[#allocation0]]
  $region57: #{tpu_custom_call.1} parent=0
    _
  %s8 = ssub.s32 1, %s6
  %s9 = scalar_select 0, %s8, %s6
  $region1: #{tpu_custom_call.1} parent=0
    #allocation2 [shape = 'u8[4096]{0}', space=vmem, size = 0x1000, scoped, tag = 'input window, operand 1, single buffered']
    #allocation3 [shape = 's32[2]{0}', space=sflag, size = 0x8, scoped, tag = 'scoped memory for tpu_custom_call.1']
    #allocation4 [shape = 's32[2]{0}', space=sflag, size = 0x8, scoped, tag = 'scoped memory for tpu_custom_call.1']
    #allocation5 [shape = 'u8[8192]{0}', space=vmem, size = 0x2000, scoped, tag = 'output window, operand 0']
    %10 = vsyncpa [#allocation3], 0
    %11 = vsyncpa [#allocation4], 0
    %s12 = scalar_lea.sflag [#allocation4], 1
    %13 = vsyncpa %s12, 0
    loop: start=0, step=1, limit=4
    $region2: #{tpu_custom_call.1} parent=1 // loop_pre_header
      _
    $region3: #{tpu_custom_call.1} parent=1 // loop_header
      %s15 = sphi 0, %s19
      %p16 = scmp.ge.s32.totalorder %s15, 4
      %s25 = sphi 0, %s27
      %s28 = sphi 0, %s25
      %s29 = sphi 0, %s28
      %s45 = sphi 0, %s29
      %s49 = sphi 0, %s49
      %s51 = sphi 0, %s49
      %s52 = sphi 0, %s51
      %s66 = sphi 0, %s52
      %s70 = sphi 0, %s70
      %s72 = sphi 0, %s70
      %s73 = sphi 0, %s72
      %s87 = sphi 0, %s73
      %s91 = sphi 0, %s91
      %s93 = sphi 0, %s91
      %s94 = sphi 0, %s93
      %s108 = sphi 0, %s94
      %s112 = sphi 0, %s112
      %s114 = sphi 0, %s112
      %s115 = sphi 0, %s114
      %s129 = sphi 0, %s115
      %s135 = sphi 0, %s137
      %s138 = sphi 0, %s135
      %s139 = sphi 0, %s138
      %s155 = sphi 0, %s139
    $region4: #{tpu_custom_call.1} parent=1 // loop_header_branch
      %18 = sbr.rel (%p16) target = $region8
    $region5: #{tpu_custom_call.1} parent=1 // loop_body
      %s20 = ssub.s32 %s15, 1
      %s21 = ssub.s32 %s15, 2
      %s22 = sadd.s32 %s15, 1
      %s23 = ssub.s32 %s15, %s22
      %p24 = scmp.eq.s32.totalorder %s23, 0
      %s26 = sadd.s32 %s25, 1
      %s27 = scalar_select %p24, %s25, %s26
      %p30 = pneg %p24
      %p31 = scmp.eq.s32.totalorder %s15, 1
      %p32 = por %p30, %p31
      %p33 = scmp.ne.s32.totalorder %s25, %s28
      %p34 = scmp.eq.s32.totalorder %s15, 0
      %p35 = por %p33, %p34
      %p36 = scmp.ne.s32.totalorder %s25, %s28
      %p37 = scmp.eq.s32.totalorder %s20, 1
      %p38 = por %p36, %p37
      %p39 = scmp.ne.s32.totalorder %s28, %s29
      %p40 = scmp.eq.s32.totalorder %s20, 0
      %p41 = por %p39, %p40
      %p42 = scmp.ne.s32.totalorder %s28, %s29
      %p43 = scmp.eq.s32.totalorder %s21, 1
      %p44 = por %p42, %p43
      %p46 = scmp.ne.s32.totalorder %s29, %s45
      %p47 = scmp.eq.s32.totalorder %s21, 0
      %p48 = por %p46, %p47
      %s50 = sadd.s32 %s49, 1
      %p53 = scmp.eq.s32.totalorder %s15, 1
      %p54 = scmp.ne.s32.totalorder %s49, %s51
      %p55 = scmp.eq.s32.totalorder %s15, 0
      %p56 = por %p54, %p55
      %p57 = scmp.ne.s32.totalorder %s49, %s51
      %p58 = scmp.eq.s32.totalorder %s20, 1
      %p59 = por %p57, %p58
      %p60 = scmp.ne.s32.totalorder %s51, %s52
      %p61 = scmp.eq.s32.totalorder %s20, 0
      %p62 = por %p60, %p61
      %p63 = scmp.ne.s32.totalorder %s51, %s52
      %p64 = scmp.eq.s32.totalorder %s21, 1
      %p65 = por %p63, %p64
      %p67 = scmp.ne.s32.totalorder %s52, %s66
      %p68 = scmp.eq.s32.totalorder %s21, 0
      %p69 = por %p67, %p68
      %s71 = sadd.s32 %s70, 1
      %p74 = scmp.eq.s32.totalorder %s15, 1
      %p75 = scmp.ne.s32.totalorder %s70, %s72
      %p76 = scmp.eq.s32.totalorder %s15, 0
      %p77 = por %p75, %p76
      %p78 = scmp.ne.s32.totalorder %s70, %s72
      %p79 = scmp.eq.s32.totalorder %s20, 1
      %p80 = por %p78, %p79
      %p81 = scmp.ne.s32.totalorder %s72, %s73
      %p82 = scmp.eq.s32.totalorder %s20, 0
      %p83 = por %p81, %p82
      %p84 = scmp.ne.s32.totalorder %s72, %s73
      %p85 = scmp.eq.s32.totalorder %s21, 1
      %p86 = por %p84, %p85
      %p88 = scmp.ne.s32.totalorder %s73, %s87
      %p89 = scmp.eq.s32.totalorder %s21, 0
      %p90 = por %p88, %p89
      %s92 = sadd.s32 %s91, 1
      %p95 = scmp.eq.s32.totalorder %s15, 1
      %p96 = scmp.ne.s32.totalorder %s91, %s93
      %p97 = scmp.eq.s32.totalorder %s15, 0
      %p98 = por %p96, %p97
      %p99 = scmp.ne.s32.totalorder %s91, %s93
      %p100 = scmp.eq.s32.totalorder %s20, 1
      %p101 = por %p99, %p100
      %p102 = scmp.ne.s32.totalorder %s93, %s94
      %p103 = scmp.eq.s32.totalorder %s20, 0
      %p104 = por %p102, %p103
      %p105 = scmp.ne.s32.totalorder %s93, %s94
      %p106 = scmp.eq.s32.totalorder %s21, 1
      %p107 = por %p105, %p106
      %p109 = scmp.ne.s32.totalorder %s94, %s108
      %p110 = scmp.eq.s32.totalorder %s21, 0
      %p111 = por %p109, %p110
      %s113 = sadd.s32 %s112, 1
      %p116 = scmp.eq.s32.totalorder %s15, 1
      %p117 = scmp.ne.s32.totalorder %s112, %s114
      %p118 = scmp.eq.s32.totalorder %s15, 0
      %p119 = por %p117, %p118
      %p120 = scmp.ne.s32.totalorder %s112, %s114
      %p121 = scmp.eq.s32.totalorder %s20, 1
      %p122 = por %p120, %p121
      %p123 = scmp.ne.s32.totalorder %s114, %s115
      %p124 = scmp.eq.s32.totalorder %s20, 0
      %p125 = por %p123, %p124
      %p126 = scmp.ne.s32.totalorder %s114, %s115
      %p127 = scmp.eq.s32.totalorder %s21, 1
      %p128 = por %p126, %p127
      %p130 = scmp.ne.s32.totalorder %s115, %s129
      %p131 = scmp.eq.s32.totalorder %s21, 0
      %p132 = por %p130, %p131
      %s133 = ssub.s32 %s15, %s22
      %p134 = scmp.eq.s32.totalorder %s133, 0
      %s136 = sadd.s32 %s135, 1
      %s137 = scalar_select %p134, %s135, %s136
      %p140 = pneg %p134
      %p141 = scmp.eq.s32.totalorder %s15, 1
      %p142 = por %p140, %p141
      %p143 = scmp.ne.s32.totalorder %s135, %s138
      %p144 = scmp.eq.s32.totalorder %s15, 0
      %p145 = por %p143, %p144
      %p146 = scmp.ne.s32.totalorder %s135, %s138
      %p147 = scmp.eq.s32.totalorder %s20, 1
      %p148 = por %p146, %p147
      %p149 = scmp.ne.s32.totalorder %s138, %s139
      %p150 = scmp.eq.s32.totalorder %s20, 0
      %p151 = por %p149, %p150
      %p152 = scmp.ne.s32.totalorder %s138, %s139
      %p153 = scmp.eq.s32.totalorder %s21, 1
      %p154 = por %p152, %p153
      %p156 = scmp.ne.s32.totalorder %s139, %s155
      %p157 = scmp.eq.s32.totalorder %s21, 0
      %p158 = por %p156, %p157
      %p159 = scmp.le.s32.totalorder 1, %s15
      %p160 = scmp.lt.s32.totalorder %s15, 3
      %p161 = pnand %p159, %p160
      %p162 = pneg %p161
      // Predicated region
      $region9: #{tpu_custom_call.1} parent=5 // pred_check
        _
      $region10: #{tpu_custom_call.1} parent=5 // pred_check_branch
        %164 = sbr.rel (%p161) target = $region12
      $region11: #{tpu_custom_call.1} parent=5 // pred_region
        %s165 = ssub.s32 %s15, 1
        // Predicated region
        $region13: #{tpu_custom_call.1} parent=11 // pred_check
          %p166 = pneg %p62
        $region14: #{tpu_custom_call.1} parent=11 // pred_check_branch
          %168 = sbr.rel (%p166) target = $region16
        $region15: #{tpu_custom_call.1} parent=11 // pred_region
          %s170 = ssub.s32 128, 128
          %171 = vsyncadd [#allocation3], %s170
          %s173 = sshll.u32 [#allocation2], 4
          %s174 = int_to_ptr.vmem [resolvable:$true] %s173
          %176 = dma.hbm_to_vmem [thread:$0]  %s1, 128, %s174, [#allocation3]
        $region16: #{tpu_custom_call.1} parent=11 // pred_fallthru
          _
        // Predicated region
        $region17: #{tpu_custom_call.1} parent=11 // pred_check
          %p177 = pneg %p83
        $region18: #{tpu_custom_call.1} parent=11 // pred_check_branch
          %179 = sbr.rel (%p177) target = $region20
        $region19: #{tpu_custom_call.1} parent=11 // pred_region
          _
        $region20: #{tpu_custom_call.1} parent=11 // pred_fallthru
          _
        // Predicated region
        $region21: #{tpu_custom_call.1} parent=11 // pred_check
          %p180 = pneg %p104
        $region22: #{tpu_custom_call.1} parent=11 // pred_check_branch
          %182 = sbr.rel (%p180) target = $region24
        $region23: #{tpu_custom_call.1} parent=11 // pred_region
          _
        $region24: #{tpu_custom_call.1} parent=11 // pred_fallthru
          _
        // Predicated region
        $region25: #{tpu_custom_call.1} parent=11 // pred_check
          %p183 = pneg %p125
        $region26: #{tpu_custom_call.1} parent=11 // pred_check_branch
          %185 = sbr.rel (%p183) target = $region28
        $region27: #{tpu_custom_call.1} parent=11 // pred_region
          _
        $region28: #{tpu_custom_call.1} parent=11 // pred_fallthru
          _
      $region12: #{tpu_custom_call.1} parent=5 // pred_fallthru
        _
      %p186 = scmp.lt.s32.totalorder %s15, 2
      // Predicated region
      $region29: #{tpu_custom_call.1} parent=5 // pred_check
        %p187 = pneg %p186
      $region30: #{tpu_custom_call.1} parent=5 // pred_check_branch
        %189 = sbr.rel (%p187) target = $region32
      $region31: #{tpu_custom_call.1} parent=5 // pred_region
        // Predicated region
        $region33: #{tpu_custom_call.1} parent=31 // pred_check
          %p190 = pneg %p35
        $region34: #{tpu_custom_call.1} parent=31 // pred_check_branch
          %192 = sbr.rel (%p190) target = $region36
        $region35: #{tpu_custom_call.1} parent=31 // pred_region
          %p193 = scmp.lt.s32.totalorder %s15, 1
          %s194 = scalar_select %p193, %s15, 1
          %s195 = smul.addr %s194, 8
          %s196 = scalar_lea.vmem %s0, %s195
        $region36: #{tpu_custom_call.1} parent=31 // pred_fallthru
          _
      $region32: #{tpu_custom_call.1} parent=5 // pred_fallthru
        _
      %p197 = scmp.le.s32.totalorder 1, %s15
      %p198 = scmp.lt.s32.totalorder %s15, 3
      %p199 = pnand %p197, %p198
      %p200 = pneg %p199
      // Predicated region
      $region37: #{tpu_custom_call.1} parent=5 // pred_check
        _
      $region38: #{tpu_custom_call.1} parent=5 // pred_check_branch
        %202 = sbr.rel (%p199) target = $region40
      $region39: #{tpu_custom_call.1} parent=5 // pred_region
        %s203 = ssub.s32 %s15, 1
        // Predicated region
        $region41: #{tpu_custom_call.1} parent=39 // pred_check
          %p204 = pneg %p62
        $region42: #{tpu_custom_call.1} parent=39 // pred_check_branch
          %206 = sbr.rel (%p204) target = $region44
        $region43: #{tpu_custom_call.1} parent=39 // pred_region
          %207 = dma.done [#allocation3], 128
        $region44: #{tpu_custom_call.1} parent=39 // pred_fallthru
          _
        %p208 = scmp.lt.s32.totalorder %s20, 1
        %s209 = scalar_select %p208, %s20, 1
        %s210 = smul.addr %s209, 8
        %s211 = scalar_lea.vmem %s0, %s210
        %p212 = pneg %p41
        %p213 = pneg %p38
        %p214 = pneg %p62
        %p215 = pneg %p59
        %p216 = pneg %p83
        %p217 = pneg %p80
        %p218 = pneg %p104
        %p219 = pneg %p101
        %p220 = pneg %p125
        %p221 = pneg %p122
        %p222 = pneg %p151
        %p223 = pneg %p148
        %s224 = sand.u32 %s138, 1
        %s225 = scalar_lea.sflag [#allocation4], %s224
        %s226 = sand.u32 %s138, 1
        %s227 = smul.addr %s226, 8
        %s228 = scalar_lea.vmem [#allocation5], %s227
        %p229 = scmp.lt.s32.totalorder %s20, 1
        %s230 = scalar_select %p229, %s20, 1
        %s231 = smul.addr %s230, 8
        %s232 = scalar_lea.vmem %s0, %s231
        %v233 = vld [vmem:[%s232] sm:$0xff]
        %v234 = vld [vmem:[#allocation2] sm:$0xff]
        %v235 = vlaneseq
        %v236 = vand.u32 %v235, 127
        %vm237 = vcmp.lt.s32.totalorder %v236, 0
        %v238 = vsub.s32 0, %v236
        %v239 = vsel %vm237, %v238, %v236
        %v240 = vshrl.u32 %v239, 7
        %v241 = vand.u32 %v239, 127
        %v242 = vsub.s32 0, %v241
        %v243 = vsel %vm237, %v242, %v241
        %vm244 = vcmp.ne.s32.totalorder %v243, 0
        %vm245 = vcmp.lt.s32.totalorder %v243, 0
        %vm246 = vmand %vm245, %vm244
        %v247 = vadd.s32 %v243, 128
        %v248 = vsel %vm246, %v247, %v243
        %249 = vrot.lane.b32.xlu0 %v233, 4
        %v250 = vpop.permute.xlu0 %249
        %vm251 = vcmp.ge.s32.totalorder %v248, 4
        %v252 = vsel %vm251, %v250, 0.0
        %253 = vrot.lane.b32.xlu0 %v233, 2
        %v254 = vpop.permute.xlu0 %253
        %vm255 = vcmp.ge.s32.totalorder %v248, 2
        %v256 = vsel %vm255, %v254, 0.0
        %v257 = vld [vmem:[%s2] sm:$0xff]
        %259 = vset.pattern.permute.xlu0 0
        %260 = vperm.xlu0 %259, %v257
        %v261 = vpop.permute.xlu0 %260
        %vm263 = vcmask 195584
        %v265 = vsel %vm263, %v234, 0
        %267 = vmatprep.subr.mxu0 0.0
        %268 = vmatpush1.msra.mxu0 %v252
        %269 = vmatprep.subr.mxu0 0.0
        %270 = vmatpush1.msra.mxu0 %v256
        %271 = vmatprep.subr.mxu0 0.0
        %272 = vmatpush1.msra.mxu0 %v233
        %273 = vmatprep.subr.mxu0 0.0
        %274 = vmatpush1.msra.mxu0 0.0
        %275 = vmatprep.subr.mxu0 0.0
        %276 = vmatpush1.msra.mxu0 0.0
        %277 = vmatprep.subr.mxu0 0.0
        %278 = vmatpush1.msra.mxu0 0.0
        %279 = vmatprep.subr.mxu0 0.0
        %280 = vmatpush1.msra.mxu0 0.0
        %281 = vmatprep.subr.mxu0 0.0
        %282 = vmatpush1.msra.mxu0 0.0
        %283 = vmatprep.subr.mxu0 0.0
        %284 = vmatpush1.msra.mxu0 0.0
        %285 = vmatprep.subr.mxu0 0.0
        %286 = vmatpush1.msra.mxu0 0.0
        %287 = vmatprep.subr.mxu0 0.0
        %288 = vmatpush1.msra.mxu0 0.0
        %289 = vmatprep.subr.mxu0 0.0
        %290 = vmatpush1.msra.mxu0 0.0
        %291 = vmatprep.subr.mxu0 0.0
        %292 = vmatpush1.msra.mxu0 0.0
        %293 = vmatprep.subr.mxu0 0.0
        %294 = vmatpush1.msra.mxu0 0.0
        %295 = vmatprep.subr.mxu0 0.0
        %296 = vmatpush1.msra.mxu0 0.0
        %297 = vmatprep.subr.mxu0 0.0
        %298 = vmatpush1.msra.mxu0 0.0
        %299 = vmatprep.subr.mxu0 0.0
        %300 = vmatpush1.msra.mxu0 0.0
        %301 = vmatprep.subr.mxu0 0.0
        %302 = vmatpush1.msra.mxu0 0.0
        %303 = vmatprep.subr.mxu0 0.0
        %304 = vmatpush1.msra.mxu0 0.0
        %305 = vmatprep.subr.mxu0 0.0
        %306 = vmatpush1.msra.mxu0 0.0
        %307 = vmatprep.subr.mxu0 0.0
        %308 = vmatpush1.msra.mxu0 0.0
        %309 = vmatprep.subr.mxu0 0.0
        %310 = vmatpush1.msra.mxu0 0.0
        %311 = vmatprep.subr.mxu0 0.0
        %312 = vmatpush1.msra.mxu0 0.0
        %313 = vmatprep.subr.mxu0 0.0
        %314 = vmatpush1.msra.mxu0 0.0
        %315 = vmatprep.subr.mxu0 0.0
        %316 = vmatpush1.msra.mxu0 0.0
        %317 = vmatprep.subr.mxu0 0.0
        %318 = vmatpush1.msra.mxu0 0.0
        %319 = vmatprep.subr.mxu0 0.0
        %320 = vmatpush1.msra.mxu0 0.0
        %321 = vmatprep.subr.mxu0 0.0
        %322 = vmatpush1.msra.mxu0 0.0
        %323 = vmatprep.subr.mxu0 0.0
        %324 = vmatpush1.msra.mxu0 0.0
        %325 = vmatprep.subr.mxu0 0.0
        %326 = vmatpush1.msra.mxu0 0.0
        %327 = vmatprep.subr.mxu0 0.0
        %328 = vmatpush1.msra.mxu0 0.0
        %329 = vmatprep.subr.mxu0 0.0
        %330 = vmatpush1.msra.mxu0 0.0
        %331 = vmatprep.mubr.f32.mxu0 0.0
        %332 = vmatmul.mubr.f32.gmra.mrb[0].mxu0 %v265
        %v333 = vpop.f32.mrb[0].mxu0
        %v334 = vadd.f32 %v261, %v333
        %v335 = vpop.f32.mrb[0].mxu0
        %336 = vdwg.mxu0
        %v337 = vmax.f32 %v334, 0.0
        %v338 = vld [vmem:[%s3] sm:$0xff]
        %339 = vrot.lane.b32.xlu0 %v337, 4
        %v340 = vpop.permute.xlu0 %339
        %v341 = vsel %vm251, %v340, 0.0
        %342 = vrot.lane.b32.xlu0 %v337, 2
        %v343 = vpop.permute.xlu0 %342
        %v344 = vsel %vm255, %v343, 0.0
        %v345 = vld [vmem:[%s4] sm:$0xff]
        %347 = vset.pattern.permute.xlu0 0
        %348 = vperm.xlu0 %347, %v345
        %v349 = vpop.permute.xlu0 %348
        %v352 = vsel %vm263, %v338, 0
        %354 = vmatprep.subr.mxu0 0.0
        %355 = vmatpush1.msra.mxu0 %v341
        %356 = vmatprep.subr.mxu0 0.0
        %357 = vmatpush1.msra.mxu0 %v344
        %358 = vmatprep.subr.mxu0 0.0
        %359 = vmatpush1.msra.mxu0 %v337
        %360 = vmatprep.subr.mxu0 0.0
        %361 = vmatpush1.msra.mxu0 0.0
        %362 = vmatprep.subr.mxu0 0.0
        %363 = vmatpush1.msra.mxu0 0.0
        %364 = vmatprep.subr.mxu0 0.0
        %365 = vmatpush1.msra.mxu0 0.0
        %366 = vmatprep.subr.mxu0 0.0
        %367 = vmatpush1.msra.mxu0 0.0
        %368 = vmatprep.subr.mxu0 0.0
        %369 = vmatpush1.msra.mxu0 0.0
        %370 = vmatprep.subr.mxu0 0.0
        %371 = vmatpush1.msra.mxu0 0.0
        %372 = vmatprep.subr.mxu0 0.0
        %373 = vmatpush1.msra.mxu0 0.0
        %374 = vmatprep.subr.mxu0 0.0
        %375 = vmatpush1.msra.mxu0 0.0
        %376 = vmatprep.subr.mxu0 0.0
        %377 = vmatpush1.msra.mxu0 0.0
        %378 = vmatprep.subr.mxu0 0.0
        %379 = vmatpush1.msra.mxu0 0.0
        %380 = vmatprep.subr.mxu0 0.0
        %381 = vmatpush1.msra.mxu0 0.0
        %382 = vmatprep.subr.mxu0 0.0
        %383 = vmatpush1.msra.mxu0 0.0
        %384 = vmatprep.subr.mxu0 0.0
        %385 = vmatpush1.msra.mxu0 0.0
        %386 = vmatprep.subr.mxu0 0.0
        %387 = vmatpush1.msra.mxu0 0.0
        %388 = vmatprep.subr.mxu0 0.0
        %389 = vmatpush1.msra.mxu0 0.0
        %390 = vmatprep.subr.mxu0 0.0
        %391 = vmatpush1.msra.mxu0 0.0
        %392 = vmatprep.subr.mxu0 0.0
        %393 = vmatpush1.msra.mxu0 0.0
        %394 = vmatprep.subr.mxu0 0.0
        %395 = vmatpush1.msra.mxu0 0.0
        %396 = vmatprep.subr.mxu0 0.0
        %397 = vmatpush1.msra.mxu0 0.0
        %398 = vmatprep.subr.mxu0 0.0
        %399 = vmatpush1.msra.mxu0 0.0
        %400 = vmatprep.subr.mxu0 0.0
        %401 = vmatpush1.msra.mxu0 0.0
        %402 = vmatprep.subr.mxu0 0.0
        %403 = vmatpush1.msra.mxu0 0.0
        %404 = vmatprep.subr.mxu0 0.0
        %405 = vmatpush1.msra.mxu0 0.0
        %406 = vmatprep.subr.mxu0 0.0
        %407 = vmatpush1.msra.mxu0 0.0
        %408 = vmatprep.subr.mxu0 0.0
        %409 = vmatpush1.msra.mxu0 0.0
        %410 = vmatprep.subr.mxu0 0.0
        %411 = vmatpush1.msra.mxu0 0.0
        %412 = vmatprep.subr.mxu0 0.0
        %413 = vmatpush1.msra.mxu0 0.0
        %414 = vmatprep.subr.mxu0 0.0
        %415 = vmatpush1.msra.mxu0 0.0
        %416 = vmatprep.subr.mxu0 0.0
        %417 = vmatpush1.msra.mxu0 0.0
        %418 = vmatprep.mubr.f32.mxu0 0.0
        %419 = vmatmul.mubr.f32.gmra.mrb[0].mxu0 %v352
        %v420 = vpop.f32.mrb[0].mxu0
        %v421 = vadd.f32 %v349, %v420
        %v422 = vpop.f32.mrb[0].mxu0
        %423 = vdwg.mxu0
        %v424 = vmax.f32 %v421, 0.0
        %v425 = vadd.f32 %v424, %v233
        %426 = vst [vmem:[%s228] sm:$0xff] %v425
        %s427 = sand.u32 %s138, 1
        %s428 = scalar_lea.sflag [#allocation4], %s427
        %s429 = sand.u32 %s138, 1
        %s430 = smul.addr %s429, 8
        %s431 = scalar_lea.vmem [#allocation5], %s430
        // Predicated region
        $region45: #{tpu_custom_call.1} parent=39 // pred_check
          %p432 = pneg %p148
        $region46: #{tpu_custom_call.1} parent=39 // pred_check_branch
          %434 = sbr.rel (%p432) target = $region48
        $region47: #{tpu_custom_call.1} parent=39 // pred_region
          %s436 = ssub.s32 128, 128
          %437 = vsyncadd %s428, %s436
          %s438 = smul.addr %s20, 128
          %s439 = scalar_lea.hbm %s5, %s438
          %s441 = sshll.u32 %s431, 4
          %s442 = int_to_ptr.vmem [resolvable:$true] %s441
          %444 = dma.vmem_to_hbm [thread:$0]  %s442, 128, %s439, %s428
        $region48: #{tpu_custom_call.1} parent=39 // pred_fallthru
          _
      $region40: #{tpu_custom_call.1} parent=5 // pred_fallthru
        _
      %p445 = scmp.le.s32.totalorder 2, %s15
      // Predicated region
      $region49: #{tpu_custom_call.1} parent=5 // pred_check
        %p446 = pneg %p445
      $region50: #{tpu_custom_call.1} parent=5 // pred_check_branch
        %448 = sbr.rel (%p446) target = $region52
      $region51: #{tpu_custom_call.1} parent=5 // pred_region
        %s449 = ssub.s32 %s15, 2
        // Predicated region
        $region53: #{tpu_custom_call.1} parent=51 // pred_check
          %p450 = pneg %p154
        $region54: #{tpu_custom_call.1} parent=51 // pred_check_branch
          %452 = sbr.rel (%p450) target = $region56
        $region55: #{tpu_custom_call.1} parent=51 // pred_region
          %s453 = sand.u32 %s139, 1
          %s454 = scalar_lea.sflag [#allocation4], %s453
          %s455 = sand.u32 %s139, 1
          %s456 = smul.addr %s455, 8
          %s457 = scalar_lea.vmem [#allocation5], %s456
          %458 = dma.done %s454, 128
        $region56: #{tpu_custom_call.1} parent=51 // pred_fallthru
          _
      $region52: #{tpu_custom_call.1} parent=5 // pred_fallthru
        _
    $region6: #{tpu_custom_call.1} parent=1 // loop_footer
      %s19 = sadd.s32 1, %s15
    $region7: #{tpu_custom_call.1} parent=1 // loop_footer_branch
      %14 = sbr.rel target = $region3
    $region8: #{tpu_custom_call.1} parent=1 // loop_exit
      _
    %459 = vsyncpa [#allocation3], 1
    %s460 = scalar_lea.sflag [#allocation3], 1
    %461 = vsyncpa %s460, 1
    %462 = vsyncpa [#allocation4], 1
    %s463 = scalar_lea.sflag [#allocation4], 1
    %464 = vsyncpa %s463, 1

</llo_original>
